<compile_context>
chip_gen: v7x
topology: tpu7x:2x2x1
jax: 0.10.0
libtpu: 0.0.40
codegen_flags: <defaults>
</compile_context>

<pallas_src>
import functools

import jax
import jax.numpy as jnp
from jax.experimental import pallas as pl
from jax.experimental.pallas import tpu as pltpu


def _bitplane_kernel(x_ref, o_ref, *, n_ch, n_bits, eps, no_weight, inv_weight):
    # x_ref: (C, TL) float        o_ref: (C * n_bits, TL) float
    y = x_ref[...].astype(jnp.int32)  # truncate toward zero, like .to(torch.int32)

    # Tiny (1, n_bits, 1) constant of single-bit masks 1 << i; the '&' below
    # broadcasts it, so no output-sized int32 iota is materialized up front.
    bit_idx = jax.lax.broadcasted_iota(jnp.int32, (1, n_bits, 1), dimension=1)
    bit_masks = jnp.left_shift(jnp.int32(1), bit_idx)

    # (C, n_bits, TL): is bit i of channel c set?
    hit = (y[:, None, :] & bit_masks) != 0

    if no_weight:
        on_val = jnp.float32(1.0 + eps)
    else:
        w = (bit_idx + 1) if not inv_weight else (n_bits - bit_idx)
        on_val = w.astype(jnp.float32) + jnp.float32(eps)  # (1, n_bits, 1), broadcasts

    # Fused convert + weight + eps-add: a single select in f32, cast once at
    # the store.
    plane = jnp.where(hit, on_val, jnp.float32(eps))

    # Contiguous collapse (C, n_bits, TL) -> (C*n_bits, TL); row-major order
    # reproduces torch.stack's channel-major-then-bit ordering.  One dense,
    # lane-major store per tile (sublane dim C*n_bits is a multiple of 8 for
    # the default n_bits=16).
    o_ref[...] = plane.reshape(n_ch * n_bits, plane.shape[-1]).astype(o_ref.dtype)


def _choose_tile_l(length, n_ch, n_bits, itemsize, *, max_tile=2048,
                   vmem_budget_bytes=16 << 20):
    """Largest 128-multiple divisor of `length` (capped) whose double-buffered
    input+output blocks stay within a conservative VMEM budget (safe on
    v5e/v6e and on v7x's smaller 64 MiB VMEM / 32 MiB default scoped limit)."""
    if length % 128 != 0:
        return length  # single full-length block (full-dim blocks are allowed)
    # x2: auto-pipelining double-buffers both the input and the output block.
    bytes_per_col = 2 * (n_ch * itemsize + n_ch * n_bits * itemsize)
    max_cols = max(128, (vmem_budget_bytes // bytes_per_col) // 128 * 128)
    tl = min(length, max_cols, max_tile)
    while length % tl != 0:  # terminates at 128 (which divides length)
        tl -= 128
    return tl


def bitplane_separation(x, n_bits=16, eps=0.001, *, no_weight=True,
                        inv_weight=False, out_dtype=None, tile_l=None):
    """Pallas implementation of BitplaneSeparation.forward.

    x: (batch, channels, length) -> (batch, channels * n_bits, length).
    Notes: float->int32 truncation and two's-complement bit extraction match
    the PyTorch reference; NaN / out-of-int32-range inputs give undefined bit
    patterns (same as the reference).
    """
    n_batch, n_ch, length = x.shape
    out_dtype = x.dtype if out_dtype is None else out_dtype

    if tile_l is None:
        tile_l = _choose_tile_l(length, n_ch, n_bits, jnp.dtype(out_dtype).itemsize)
    assert length % tile_l == 0, (length, tile_l)

    kernel = functools.partial(
        _bitplane_kernel, n_ch=n_ch, n_bits=n_bits, eps=eps,
        no_weight=no_weight, inv_weight=inv_weight)

    return pl.pallas_call(
        kernel,
        out_shape=jax.ShapeDtypeStruct((n_batch, n_ch * n_bits, length), out_dtype),
        grid_spec=pltpu.PrefetchScalarGridSpec(
            num_scalar_prefetch=0,
            grid=(n_batch, length // tile_l),
            in_specs=[pl.BlockSpec((pl.Squeezed(), n_ch, tile_l),
                                   lambda b, l: (b, 0, l))],
            out_specs=pl.BlockSpec((pl.Squeezed(), n_ch * n_bits, tile_l),
                                   lambda b, l: (b, 0, l)),
        ),
        compiler_params=pltpu.CompilerParams(
            dimension_semantics=("parallel", "parallel")),
    )(x)


def _reference(x, n_bits=16, eps=0.001, no_weight=True, inv_weight=False):
    """Pure-JAX reference mirroring the PyTorch loop, for correctness check."""
    n_batch, n_ch, length = x.shape
    y = x.astype(jnp.int32)
    planes = []
    for c in range(n_ch):
        y_ch = y[:, c, :]
        for i in range(n_bits):
            if no_weight:
                plane = (y_ch & 1).astype(x.dtype) + eps
            else:
                w = i + 1 if not inv_weight else n_bits - i
                plane = w * (y_ch & 1).astype(x.dtype) + eps
            planes.append(plane)
            y_ch = y_ch >> 1
    return jnp.stack(planes, axis=1)


if __name__ == "__main__":
    key = jax.random.PRNGKey(0)
    B, C, L = 2, 4, 512
    N_BITS = 16
    # 16-bit-range integer-valued samples stored as float32 (typical use case)
    x = jax.random.randint(key, (B, C, L), 0, 1 << N_BITS).astype(jnp.float32)

    # Default (no_weight=True) path; tile_l=128 exercises the L-tiled grid.
    out = bitplane_separation(x, n_bits=N_BITS, eps=0.001, tile_l=128)
    out = jax.block_until_ready(out)
    ref = _reference(x, n_bits=N_BITS, eps=0.001)
    assert out.shape == (B, C * N_BITS, L), out.shape
    assert jnp.allclose(out, ref, atol=1e-6), "mismatch vs reference (no_weight)"

    # Weighted path (no_weight=False, inv_weight=True), auto tile size.
    out_w = bitplane_separation(x, n_bits=N_BITS, eps=0.001,
                                no_weight=False, inv_weight=True)
    out_w = jax.block_until_ready(out_w)
    ref_w = _reference(x, n_bits=N_BITS, eps=0.001, no_weight=False, inv_weight=True)
    assert jnp.allclose(out_w, ref_w, atol=1e-6), "mismatch vs reference (weighted)"

    print("KERNEL_OK")
</pallas_src>

<mosaic_0001>
module attributes {stable_mosaic.version = 11 : i64} {
  func.func @_bitplane_kernel(%arg0: i32, %arg1: i32, %arg2: memref<1x4x128xf32, #tpu.memory_space<vmem>>, %arg3: memref<1x64x128xf32, #tpu.memory_space<vmem>>) attributes {dimension_semantics = [#tpu.dimension_semantics<parallel>, #tpu.dimension_semantics<parallel>], iteration_bounds = array<i64: 2, 4>, scalar_prefetch = 0 : i64, scratch_operands = 0 : i64, tpu.core_type = #tpu.core_type<tc>, window_params = [{transform_indices = @transform_0, window_bounds = array<i64: 1, 4, 128>}, {transform_indices = @transform_1, window_bounds = array<i64: 1, 64, 128>}]} {
    %c0 = arith.constant 0 : index
    %c0_0 = arith.constant 0 : index
    %c0_1 = arith.constant 0 : index
    %0 = vector.load %arg2[%c0, %c0_0, %c0_1] : memref<1x4x128xf32, #tpu.memory_space<vmem>>, vector<1x4x128xf32>
    %1 = vector.shape_cast %0 : vector<1x4x128xf32> to vector<4x128xf32>
    %2 = arith.fptosi %1 : vector<4x128xf32> to vector<4x128xi32>
    %3 = tpu.iota {dimensions = array<i32: 1>} : vector<1x16x1xi32>
    %c1_i32 = arith.constant 1 : i32
    %4 = vector.broadcast %c1_i32 : i32 to vector<1x16x1xi32>
    %5 = arith.shli %4, %3 : vector<1x16x1xi32>
    %6 = vector.shape_cast %2 : vector<4x128xi32> to vector<4x1x128xi32>
    %7 = vector.broadcast %6 : vector<4x1x128xi32> to vector<4x16x128xi32>
    %8 = vector.broadcast %5 : vector<1x16x1xi32> to vector<4x16x128xi32>
    %9 = arith.andi %7, %8 : vector<4x16x128xi32>
    %c0_i32 = arith.constant 0 : i32
    %10 = vector.broadcast %c0_i32 : i32 to vector<4x16x128xi32>
    %11 = arith.cmpi ne, %9, %10 : vector<4x16x128xi32>
    %cst = arith.constant 1.001000e+00 : f32
    %cst_2 = arith.constant 1.000000e-03 : f32
    %12 = vector.broadcast %cst : f32 to vector<4x16x128xf32>
    %13 = vector.broadcast %cst_2 : f32 to vector<4x16x128xf32>
    %14 = arith.select %11, %12, %13 : vector<4x16x128xi1>, vector<4x16x128xf32>
    %15 = vector.shape_cast %14 : vector<4x16x128xf32> to vector<64x128xf32>
    %c0_3 = arith.constant 0 : index
    %c0_4 = arith.constant 0 : index
    %c0_5 = arith.constant 0 : index
    %16 = vector.load %arg3[%c0_3, %c0_4, %c0_5] : memref<1x64x128xf32, #tpu.memory_space<vmem>>, vector<1x64x128xf32>
    %17 = vector.shape_cast %16 : vector<1x64x128xf32> to vector<64x128xf32>
    %18 = vector.shape_cast %15 : vector<64x128xf32> to vector<1x64x128xf32>
    tpu.vector_store %arg3[%c0_3, %c0_4, %c0_5], %18 {strides = array<i32>} : memref<1x64x128xf32, #tpu.memory_space<vmem>>, vector<1x64x128xf32>,
    return
  }
  func.func @transform_0(%arg0: i32, %arg1: i32) -> (i32, i32, i32) {
    %c0_i32 = arith.constant 0 : i32
    %c0_i32_0 = arith.constant 0 : i32
    return %arg0, %c0_i32, %arg1 : i32, i32, i32
  }
  func.func @transform_1(%arg0: i32, %arg1: i32) -> (i32, i32, i32) {
    %c0_i32 = arith.constant 0 : i32
    %c0_i32_0 = arith.constant 0 : i32
    return %arg0, %c0_i32, %arg1 : i32, i32, i32
  }
}

</mosaic_0001>

<llo_original>
// kernel: tpu_custom_call.1
$region0: #{tpu_custom_call.1}
  #allocation0 [shape = 'u32[]', space=smem, size = 0x4, offset = 0x4, fixed_abs, tag = 'smem constant byte address 0x4 - core index']
  #allocation1 [shape = 'u32[144,128]{1,0:T(1,128)}', space=vmem, size = 0x12000, scoped, tag = 'internal scratch']
  %s0 = inlined_call_operand.hbm [shape: f32[2,4,512], index: 0, kind: input, shape index: {}]
  %s1 = inlined_call_operand.hbm [shape: f32[2,64,512], index: 1, kind: output, shape index: {}]
  %s2 = sld [smem:[#allocation0]]
  $region41: #{tpu_custom_call.1} parent=0
    _
  %s4 = ssub.s32 1, %s2
  %s5 = scalar_select 0, %s4, %s2
  $region1: #{tpu_custom_call.1} parent=0
    #allocation2 [shape = 'u8[4096]{0}', space=vmem, size = 0x1000, scoped, tag = 'input window, operand 0']
    #allocation3 [shape = 's32[2]{0}', space=sflag, size = 0x8, scoped, tag = 'scoped memory for tpu_custom_call.1']
    #allocation4 [shape = 's32[2]{0}', space=sflag, size = 0x8, scoped, tag = 'scoped memory for tpu_custom_call.1']
    #allocation5 [shape = 'u8[65536]{0}', space=vmem, size = 0x10000, scoped, tag = 'output window, operand 0']
    %6 = vsyncpa [#allocation3], 0
    %s7 = scalar_lea.sflag [#allocation3], 1
    %8 = vsyncpa %s7, 0
    %9 = vsyncpa [#allocation4], 0
    %s10 = scalar_lea.sflag [#allocation4], 1
    %11 = vsyncpa %s10, 0
    loop: start=0, step=1, limit=10
    $region2: #{tpu_custom_call.1} parent=1 // loop_pre_header
      _
    $region3: #{tpu_custom_call.1} parent=1 // loop_header
      %s13 = sphi 0, %s17
      %p14 = scmp.ge.s32.totalorder %s13, 10
      %s20 = sphi 0, %s32
      %s21 = sphi 0, %s28
      %s22 = sphi 0, %s20
      %s23 = sphi 0, %s21
      %s24 = sphi 0, %s22
      %s25 = sphi 0, %s23
      %s37 = sphi 0, %s39
      %s40 = sphi 0, %s37
      %s41 = sphi 0, %s40
      %s57 = sphi 0, %s41
      %s65 = sphi 0, %s67
      %s68 = sphi 0, %s65
      %s69 = sphi 0, %s68
      %s85 = sphi 0, %s69
    $region4: #{tpu_custom_call.1} parent=1 // loop_header_branch
      %16 = sbr.rel (%p14) target = $region8
    $region5: #{tpu_custom_call.1} parent=1 // loop_body
      %s18 = ssub.s32 %s13, 1
      %s19 = ssub.s32 %s13, 2
      %s26 = sadd.s32 1, %s21
      %p27 = scmp.ge.s32.totalorder %s26, 4
      %s28 = scalar_select %p27, 0, %s26
      %s29 = sadd.s32 1, %s20
      %s30 = scalar_select %p27, %s29, %s20
      %p31 = scmp.ge.s32.totalorder %s30, 2
      %s32 = scalar_select %p31, 0, %s30
      %s33 = ssub.s32 %s20, %s32
      %s34 = ssub.s32 %s21, %s28
      %s35 = sor.u32 %s33, %s34
      %p36 = scmp.eq.s32.totalorder %s35, 0
      %s38 = sadd.s32 %s37, 1
      %s39 = scalar_select %p36, %s37, %s38
      %p42 = pneg %p36
      %p43 = scmp.eq.s32.totalorder %s13, 7
      %p44 = por %p42, %p43
      %p45 = scmp.ne.s32.totalorder %s37, %s40
      %p46 = scmp.eq.s32.totalorder %s13, 0
      %p47 = por %p45, %p46
      %p48 = scmp.ne.s32.totalorder %s37, %s40
      %p49 = scmp.eq.s32.totalorder %s18, 7
      %p50 = por %p48, %p49
      %p51 = scmp.ne.s32.totalorder %s40, %s41
      %p52 = scmp.eq.s32.totalorder %s18, 0
      %p53 = por %p51, %p52
      %p54 = scmp.ne.s32.totalorder %s40, %s41
      %p55 = scmp.eq.s32.totalorder %s19, 7
      %p56 = por %p54, %p55
      %p58 = scmp.ne.s32.totalorder %s41, %s57
      %p59 = scmp.eq.s32.totalorder %s19, 0
      %p60 = por %p58, %p59
      %s61 = ssub.s32 %s20, %s32
      %s62 = ssub.s32 %s21, %s28
      %s63 = sor.u32 %s61, %s62
      %p64 = scmp.eq.s32.totalorder %s63, 0
      %s66 = sadd.s32 %s65, 1
      %s67 = scalar_select %p64, %s65, %s66
      %p70 = pneg %p64
      %p71 = scmp.eq.s32.totalorder %s13, 7
      %p72 = por %p70, %p71
      %p73 = scmp.ne.s32.totalorder %s65, %s68
      %p74 = scmp.eq.s32.totalorder %s13, 0
      %p75 = por %p73, %p74
      %p76 = scmp.ne.s32.totalorder %s65, %s68
      %p77 = scmp.eq.s32.totalorder %s18, 7
      %p78 = por %p76, %p77
      %p79 = scmp.ne.s32.totalorder %s68, %s69
      %p80 = scmp.eq.s32.totalorder %s18, 0
      %p81 = por %p79, %p80
      %p82 = scmp.ne.s32.totalorder %s68, %s69
      %p83 = scmp.eq.s32.totalorder %s19, 7
      %p84 = por %p82, %p83
      %p86 = scmp.ne.s32.totalorder %s69, %s85
      %p87 = scmp.eq.s32.totalorder %s19, 0
      %p88 = por %p86, %p87
      %p89 = scmp.le.s32.totalorder 1, %s13
      %p90 = scmp.lt.s32.totalorder %s13, 9
      %p91 = pnand %p89, %p90
      %p92 = pneg %p91
      // Predicated region
      $region9: #{tpu_custom_call.1} parent=5 // pred_check
        _
      $region10: #{tpu_custom_call.1} parent=5 // pred_check_branch
        %94 = sbr.rel (%p91) target = $region12
      $region11: #{tpu_custom_call.1} parent=5 // pred_region
        %s95 = ssub.s32 %s13, 1
      $region12: #{tpu_custom_call.1} parent=5 // pred_fallthru
        _
      %p96 = scmp.lt.s32.totalorder %s13, 8
      // Predicated region
      $region13: #{tpu_custom_call.1} parent=5 // pred_check
        %p97 = pneg %p96
      $region14: #{tpu_custom_call.1} parent=5 // pred_check_branch
        %99 = sbr.rel (%p97) target = $region16
      $region15: #{tpu_custom_call.1} parent=5 // pred_region
        // Predicated region
        $region17: #{tpu_custom_call.1} parent=15 // pred_check
          %p100 = pneg %p47
        $region18: #{tpu_custom_call.1} parent=15 // pred_check_branch
          %102 = sbr.rel (%p100) target = $region20
        $region19: #{tpu_custom_call.1} parent=15 // pred_region
          %s103 = sand.u32 %s37, 1
          %s104 = scalar_lea.sflag [#allocation3], %s103
          %s105 = sand.u32 %s37, 1
          %s106 = smul.addr %s105, 4
          %s107 = scalar_lea.vmem [#allocation2], %s106
          %s109 = ssub.s32 64, 64
          %110 = vsyncadd %s104, %s109
          %s111 = smul.addr %s20, 4
          %s112 = sadd.s32 %s21, %s111
          %s113 = smul.addr %s112, 64
          %s114 = scalar_lea.hbm %s0, %s113
          %s116 = sshll.u32 %s107, 4
          %s117 = int_to_ptr.vmem [resolvable:$true] %s116
          %119 = dma.hbm_to_vmem [thread:$0]  %s114, 64, %s117, %s104
        $region20: #{tpu_custom_call.1} parent=15 // pred_fallthru
          _
      $region16: #{tpu_custom_call.1} parent=5 // pred_fallthru
        _
      %p120 = scmp.le.s32.totalorder 1, %s13
      %p121 = scmp.lt.s32.totalorder %s13, 9
      %p122 = pnand %p120, %p121
      %p123 = pneg %p122
      // Predicated region
      $region21: #{tpu_custom_call.1} parent=5 // pred_check
        _
      $region22: #{tpu_custom_call.1} parent=5 // pred_check_branch
        %125 = sbr.rel (%p122) target = $region24
      $region23: #{tpu_custom_call.1} parent=5 // pred_region
        %s126 = ssub.s32 %s13, 1
        %s127 = sand.u32 %s40, 1
        %s128 = scalar_lea.sflag [#allocation3], %s127
        %s129 = sand.u32 %s40, 1
        %s130 = smul.addr %s129, 4
        %s131 = scalar_lea.vmem [#allocation2], %s130
        // Predicated region
        $region25: #{tpu_custom_call.1} parent=23 // pred_check
          %p132 = pneg %p53
        $region26: #{tpu_custom_call.1} parent=23 // pred_check_branch
          %134 = sbr.rel (%p132) target = $region28
        $region27: #{tpu_custom_call.1} parent=23 // pred_region
          %135 = dma.done %s128, 64
        $region28: #{tpu_custom_call.1} parent=23 // pred_fallthru
          _
        %s136 = sand.u32 %s40, 1
        %s137 = scalar_lea.sflag [#allocation3], %s136
        %s138 = sand.u32 %s40, 1
        %s139 = smul.addr %s138, 4
        %s140 = scalar_lea.vmem [#allocation2], %s139
        %p141 = pneg %p53
        %p142 = pneg %p50
        %p143 = pneg %p81
        %p144 = pneg %p78
        %s145 = sand.u32 %s68, 1
        %s146 = scalar_lea.sflag [#allocation4], %s145
        %s147 = sand.u32 %s68, 1
        %s148 = smul.addr %s147, 64
        %s149 = scalar_lea.vmem [#allocation5], %s148
        %v150 = vld [vmem:[%s131] sm:$0xf]
        %v151 = vcvt.f32.s32.to.zero.pseudo %v150
        %v152 = vlaneseq
        %v153 = vshrl.u32 %v152, 7
        %v154 = vadd.s32 %v153, 8
        %v155 = vshll.u32 1, %v153
        %v156 = vshll.u32 1, %v154
        %v158 = vunpack.c.l.s4 1966171168
        %v159 = vunpack.c.0.s8 %v158
        %v160 = vlaneseq
        %v161 = vshrl.u32 %v160, 7
        %v162 = vsub.s32 %v159, %v161
        %v163 = vrot.slane %v151, %v162
        %v164 = vcombine.high %v163, %v163
        %v166 = vunpack.c.l.s4 1966171168
        %v167 = vunpack.c.0.s8 %v166
        %v168 = vlaneseq
        %v169 = vshrl.u32 %v168, 7
        %v170 = vsub.s32 %v167, %v169
        %v171 = vrot.slane %v163, %v170
        %v173 = vunpack.c.l.s4 1966171168
        %v174 = vunpack.c.0.s8 %v173
        %v175 = vlaneseq
        %v176 = vshrl.u32 %v175, 7
        %v177 = vsub.s32 %v174, %v176
        %v178 = vrot.slane %v164, %v177
        %v179 = vcombine.high %v171, %v171
        %v180 = vcombine.high %v178, %v178
        %v181 = vlaneseq
        %v182 = vshrl.u32 %v181, 7
        %v183 = vsub.s32 0, %v182
        %v184 = vrot.slane %v171, %v183
        %v185 = vlaneseq
        %v186 = vshrl.u32 %v185, 7
        %v187 = vsub.s32 0, %v186
        %v188 = vrot.slane %v178, %v187
        %v189 = vlaneseq
        %v190 = vshrl.u32 %v189, 7
        %v191 = vsub.s32 0, %v190
        %v192 = vrot.slane %v179, %v191
        %v193 = vlaneseq
        %v194 = vshrl.u32 %v193, 7
        %v195 = vsub.s32 0, %v194
        %v196 = vrot.slane %v180, %v195
        %v197 = vand.u32 %v184, %v155
        %v198 = vand.u32 %v184, %v156
        %v199 = vand.u32 %v188, %v155
        %v200 = vand.u32 %v188, %v156
        %v201 = vand.u32 %v192, %v155
        %v202 = vand.u32 %v192, %v156
        %v203 = vand.u32 %v196, %v155
        %v204 = vand.u32 %v196, %v156
        %vm205 = vcmp.ne.s32.totalorder %v197, 0
        %vm206 = vcmp.ne.s32.totalorder %v198, 0
        %vm207 = vcmp.ne.s32.totalorder %v199, 0
        %vm208 = vcmp.ne.s32.totalorder %v200, 0
        %vm209 = vcmp.ne.s32.totalorder %v201, 0
        %vm210 = vcmp.ne.s32.totalorder %v202, 0
        %vm211 = vcmp.ne.s32.totalorder %v203, 0
        %vm212 = vcmp.ne.s32.totalorder %v204, 0
        %v213 = vsel %vm205, 1.001, 0.001
        %v214 = vsel %vm206, 1.001, 0.001
        %v215 = vsel %vm207, 1.001, 0.001
        %v216 = vsel %vm208, 1.001, 0.001
        %v217 = vsel %vm209, 1.001, 0.001
        %v218 = vsel %vm210, 1.001, 0.001
        %v219 = vsel %vm211, 1.001, 0.001
        %v220 = vsel %vm212, 1.001, 0.001
        %221 = vst [vmem:[%s149] sm:$0xff] %v213
        %222 = vst [vmem:[%s149 + $0x8] sm:$0xff] %v214
        %223 = vst [vmem:[%s149 + $0x10] sm:$0xff] %v215
        %224 = vst [vmem:[%s149 + $0x18] sm:$0xff] %v216
        %225 = vst [vmem:[%s149 + $0x20] sm:$0xff] %v217
        %226 = vst [vmem:[%s149 + $0x28] sm:$0xff] %v218
        %227 = vst [vmem:[%s149 + $0x30] sm:$0xff] %v219
        %228 = vst [vmem:[%s149 + $0x38] sm:$0xff] %v220
        %s229 = sand.u32 %s68, 1
        %s230 = scalar_lea.sflag [#allocation4], %s229
        %s231 = sand.u32 %s68, 1
        %s232 = smul.addr %s231, 64
        %s233 = scalar_lea.vmem [#allocation5], %s232
        // Predicated region
        $region29: #{tpu_custom_call.1} parent=23 // pred_check
          %p234 = pneg %p78
        $region30: #{tpu_custom_call.1} parent=23 // pred_check_branch
          %236 = sbr.rel (%p234) target = $region32
        $region31: #{tpu_custom_call.1} parent=23 // pred_region
          %s238 = ssub.s32 1024, 1024
          %239 = vsyncadd %s230, %s238
          %s240 = smul.addr %s22, 32
          %s241 = sadd.s32 %s23, %s240
          %s242 = smul.addr %s241, 128
          %s243 = scalar_lea.hbm %s1, %s242
          %s244 = sshll.u32 %s233, 4
          %s245 = int_to_ptr.vmem [resolvable:$true] %s244
          %250 = dma.vmem_to_hbm [thread:$0]  %s245, 1024, %s243, %s230, 128, 512, 8
        $region32: #{tpu_custom_call.1} parent=23 // pred_fallthru
          _
      $region24: #{tpu_custom_call.1} parent=5 // pred_fallthru
        _
      %p251 = scmp.le.s32.totalorder 2, %s13
      // Predicated region
      $region33: #{tpu_custom_call.1} parent=5 // pred_check
        %p252 = pneg %p251
      $region34: #{tpu_custom_call.1} parent=5 // pred_check_branch
        %254 = sbr.rel (%p252) target = $region36
      $region35: #{tpu_custom_call.1} parent=5 // pred_region
        %s255 = ssub.s32 %s13, 2
        // Predicated region
        $region37: #{tpu_custom_call.1} parent=35 // pred_check
          %p256 = pneg %p84
        $region38: #{tpu_custom_call.1} parent=35 // pred_check_branch
          %258 = sbr.rel (%p256) target = $region40
        $region39: #{tpu_custom_call.1} parent=35 // pred_region
          %s259 = sand.u32 %s69, 1
          %s260 = scalar_lea.sflag [#allocation4], %s259
          %s261 = sand.u32 %s69, 1
          %s262 = smul.addr %s261, 64
          %s263 = scalar_lea.vmem [#allocation5], %s262
          %264 = dma.done %s260, 1024
        $region40: #{tpu_custom_call.1} parent=35 // pred_fallthru
          _
      $region36: #{tpu_custom_call.1} parent=5 // pred_fallthru
        _
    $region6: #{tpu_custom_call.1} parent=1 // loop_footer
      %s17 = sadd.s32 1, %s13
    $region7: #{tpu_custom_call.1} parent=1 // loop_footer_branch
      %12 = sbr.rel target = $region3
    $region8: #{tpu_custom_call.1} parent=1 // loop_exit
      _
    %265 = vsyncpa [#allocation3], 1
    %s266 = scalar_lea.sflag [#allocation3], 1
    %267 = vsyncpa %s266, 1
    %268 = vsyncpa [#allocation4], 1
    %s269 = scalar_lea.sflag [#allocation4], 1
    %270 = vsyncpa %s269, 1

</llo_original>
